<compile_context>
chip_gen: v7x
topology: tpu7x:2x2x1
jax: 0.10.0
libtpu: 0.0.40
codegen_flags: <defaults>
</compile_context>

<pallas_src>
import functools

import jax
import jax.numpy as jnp
from jax.experimental import pallas as pl
from jax.experimental.pallas import tpu as pltpu

NEG_SLOPE = 0.01                      # F.leaky_relu default negative_slope
BN_EPS = 1e-5                         # nn.BatchNorm2d default eps
LANE = 128                            # lane width (MXU / vreg) for the matmul RHS
TM_MAX = 2048                         # M-tile rows (review: 1024+ reaches ~86% of HBM roofline)
VMEM_LIMIT = 48 * 1024 * 1024         # <= v7x's 64 MiB physical VMEM; raises v5e/v6e scoped default
FUSED_VMEM_BUDGET = 24 * 1024 * 1024  # budget for the VMEM-resident output of the fused path


def _round_up(x, m):
    return (x + m - 1) // m * m


# ----------------------------------------------------------------------------------
# Fused single-pass kernel (small/medium problems): patches read from HBM exactly once.
# ----------------------------------------------------------------------------------
def _fused_kernel(p_ref, w_ref, gb_ref, o_ref, acc_ref, *, tm, cout, inv_count):
    """grid axis is 'arbitrary' (sequential): the whole (M_pad, Cout) raw conv output is
    resident in o_ref across the grid; acc_ref carries per-channel sum / sum-of-squares.

    step i : y_i = patches_i @ w (bf16 MXU operands, f32 accumulation); write the raw
             y_i slab into o_ref; accumulate BN sums.
    last   : finalize mean/var (f32, biased), scale/shift with gamma/beta, leaky_relu
             the whole resident output in place.  Pallas writes it to HBM once.
    """
    i = pl.program_id(0)

    @pl.when(i == 0)
    def _():
        acc_ref[...] = jnp.zeros_like(acc_ref)

    y = jnp.dot(p_ref[...], w_ref[...], preferred_element_type=jnp.float32)   # (TM, Cpad) f32
    s1 = jnp.sum(y, axis=0, keepdims=True)
    s2 = jnp.sum(y * y, axis=0, keepdims=True)
    acc_ref[...] += jnp.concatenate([s1, s2], axis=0)                          # (2, Cpad)

    row0 = pl.multiple_of(i * tm, tm)
    o_ref[pl.ds(row0, tm), :] = y[:, :cout]                                    # raw conv out slab

    @pl.when(i == pl.num_programs(0) - 1)
    def _():
        acc = acc_ref[...]
        mean = acc[0:1, :cout] * inv_count                                     # (1, Cout) f32
        var = jnp.maximum(acc[1:2, :cout] * inv_count - mean * mean, 0.0)      # biased variance
        inv_std = jax.lax.rsqrt(var + BN_EPS)
        scale = gb_ref[0:1, :] * inv_std                                       # gamma / sqrt(var+eps)
        shift = gb_ref[1:2, :] - mean * scale                                  # beta - mean*scale
        z = o_ref[...] * scale + shift
        o_ref[...] = jnp.where(z >= 0, z, NEG_SLOPE * z)


# ----------------------------------------------------------------------------------
# Two-pass fallback (large problems): both passes have a fully 'parallel' grid axis.
# ----------------------------------------------------------------------------------
def _stats_kernel(p_ref, w_ref, stats_ref):
    """Pass 1: per-tile partial BN sums.  Single full-block store (no zero-fill + masked
    row writes).  Zero-padded pixel rows / channels contribute exactly 0."""
    y = jnp.dot(p_ref[...], w_ref[...], preferred_element_type=jnp.float32)   # (TM, Cpad) f32
    s1 = jnp.sum(y, axis=0, keepdims=True)
    s2 = jnp.sum(y * y, axis=0, keepdims=True)
    pad = jnp.zeros((6, y.shape[1]), jnp.float32)
    stats_ref[...] = jnp.concatenate([s1, s2, pad], axis=0)[None]              # (1, 8, Cpad)


def _bn_lrelu_kernel(p_ref, w_ref, ss_ref, o_ref, *, cout):
    """Pass 2: recompute the tile matmul, apply the wrapper-precomputed per-channel
    scale/shift (no per-tile rsqrt), leaky_relu.  Output is the unpadded (TM, Cout)."""
    y = jnp.dot(p_ref[...], w_ref[...], preferred_element_type=jnp.float32)[:, :cout]
    z = y * ss_ref[0:1, :] + ss_ref[1:2, :]
    o_ref[...] = jnp.where(z >= 0, z, NEG_SLOPE * z).astype(o_ref.dtype)


@functools.partial(jax.jit, static_argnames=("stride", "padding", "force_two_pass"))
def conv_layer_forward(x_nchw, w_oihw, gamma, beta, *, stride=2, padding=1,
                       force_two_pass=False):
    N, Cin, H, W = x_nchw.shape
    Cout, _, KH, KW = w_oihw.shape
    OH = (H + 2 * padding - KH) // stride + 1
    OW = (W + 2 * padding - KW) // stride + 1
    M = N * OH * OW
    K = KH * KW * Cin

    Kpad = _round_up(K, 16)            # bf16 packs 2 rows/sublane -> keep RHS sublanes full
    Cpad = _round_up(Cout, LANE)       # MXU / lane width for the matmul RHS only

    # ---- tile size: biggest TM whose double-buffered working set leaves ample headroom
    #      under the 48 MiB scoped-VMEM cap (v7x-safe). ----
    TM = min(TM_MAX, _round_up(M, 16))

    def _tile_bytes(tm):
        return (2 * tm * Kpad * 2                 # patch tile, double buffered (bf16)
                + 2 * Kpad * Cpad * 2             # weights (resident; budget 2 bufs)
                + 2 * tm * max(Cout, 8) * 4       # output tile, double buffered (f32)
                + tm * Cpad * 4)                  # f32 y intermediate

    while TM > 16 and _tile_bytes(TM) > VMEM_LIMIT // 2:
        TM //= 2
    TM = max(16, _round_up(TM, 16))
    M_pad = _round_up(M, TM)
    n_tiles = M_pad // TM
    # v7x megacore: the 'parallel' axis shards tiles across 2 TensorCores; prefer an even
    # tile count so neither core idles on the tail.
    if n_tiles > 1 and n_tiles % 2 == 1:
        TM = max(16, _round_up(TM // 2, 16))
        M_pad = _round_up(M, TM)
        n_tiles = M_pad // TM

    # ---- layout glue (bf16 BEFORE pad/slice/concat: im2col intermediates dominate the
    #      wrapper-side HBM traffic, so keep every intermediate half-width) ----
    x = jnp.transpose(x_nchw, (0, 2, 3, 1)).astype(jnp.bfloat16)
    xp = jnp.pad(x, ((0, 0), (padding, padding), (padding, padding), (0, 0)))
    cols = []
    for kh in range(KH):
        for kw in range(KW):
            cols.append(xp[:, kh:kh + stride * (OH - 1) + 1:stride,
                              kw:kw + stride * (OW - 1) + 1:stride, :])
    patches = jnp.concatenate(cols, axis=-1).reshape(M, K)        # rows ordered (n, oh, ow)
    patches = jnp.pad(patches, ((0, M_pad - M), (0, Kpad - K)))
    # TODO(synk): in-kernel tap-loop gather over xp would remove this materialization.

    # weights (Cout, Cin, KH, KW) -> (KH, KW, Cin, Cout) -> (Kpad, Cpad) bf16
    wmat = jnp.transpose(w_oihw, (2, 3, 1, 0)).reshape(K, Cout).astype(jnp.bfloat16)
    wmat = jnp.pad(wmat, ((0, Kpad - K), (0, Cpad - Cout)))

    inv_count = 1.0 / float(M)
    mm_flops = 2 * M_pad * Kpad * Cpad
    patch_bytes = M_pad * Kpad * 2
    wmat_bytes = Kpad * Cpad * 2
    out_bytes = M_pad * Cout * 4

    fused_working_set = (M_pad * Cout * 4          # VMEM-resident raw conv output
                         + _tile_bytes(TM)         # streamed patch / weight buffers
                         + 8 * Cpad * 4 + 8 * Cout * 4)
    use_fused = (not force_two_pass) and fused_working_set <= FUSED_VMEM_BUDGET

    if use_fused:
        # ---- single pass: patches read once, stats + normalization fused ----
        gb = jnp.stack([gamma.astype(jnp.float32), beta.astype(jnp.float32)], axis=0)
        gb = jnp.pad(gb, ((0, 6), (0, 0)))                                     # (8, Cout)
        kernel = functools.partial(_fused_kernel, tm=TM, cout=Cout, inv_count=inv_count)
        out = pl.pallas_call(
            kernel,
            out_shape=jax.ShapeDtypeStruct((M_pad, Cout), jnp.float32),
            grid=(n_tiles,),
            in_specs=[
                pl.BlockSpec((TM, Kpad), lambda i: (i, 0)),       # patch tile (streamed)
                pl.BlockSpec((Kpad, Cpad), lambda i: (0, 0)),     # weights (resident)
                pl.BlockSpec((8, Cout), lambda i: (0, 0)),        # gamma / beta (resident)
            ],
            out_specs=pl.BlockSpec((M_pad, Cout), lambda i: (0, 0)),  # VMEM-resident output
            scratch_shapes=[pltpu.VMEM((2, Cpad), jnp.float32)],      # BN sum / sumsq carry
            compiler_params=pltpu.CompilerParams(
                dimension_semantics=("arbitrary",),               # cross-tile accumulator
                vmem_limit_bytes=VMEM_LIMIT),
            cost_estimate=pl.CostEstimate(
                flops=mm_flops + 4 * M_pad * Cout, transcendentals=Cout,
                bytes_accessed=patch_bytes + wmat_bytes + out_bytes),
        )(patches, wmat, gb)
    else:
        par = pltpu.CompilerParams(dimension_semantics=("parallel",),
                                   vmem_limit_bytes=VMEM_LIMIT)
        # NOTE: if DMA latency is still exposed on v6e, add pipeline_mode=pl.Buffered(3)
        # to the patch-tile BlockSpecs below (re-check VMEM headroom on v7x).

        # ---- pass 1: conv matmul + per-tile partial BN sums ----
        stats = pl.pallas_call(
            _stats_kernel,
            out_shape=jax.ShapeDtypeStruct((n_tiles, 8, Cpad), jnp.float32),
            grid=(n_tiles,),
            in_specs=[
                pl.BlockSpec((TM, Kpad), lambda i: (i, 0)),
                pl.BlockSpec((Kpad, Cpad), lambda i: (0, 0)),
            ],
            out_specs=pl.BlockSpec((1, 8, Cpad), lambda i: (i, 0, 0)),
            compiler_params=par,
            cost_estimate=pl.CostEstimate(
                flops=mm_flops, transcendentals=0,
                bytes_accessed=patch_bytes + wmat_bytes + n_tiles * 8 * Cpad * 4),
        )(patches, wmat)

        # tiny cross-tile reduction + scale/shift precompute (O(Cout) XLA work)
        totals = jnp.sum(stats[:, 0:2, :Cout], axis=0)                        # (2, Cout)
        mean = totals[0] * inv_count
        var = jnp.maximum(totals[1] * inv_count - mean * mean, 0.0)           # biased variance
        inv_std = jax.lax.rsqrt(var + BN_EPS)
        scale = gamma.astype(jnp.float32) * inv_std
        shift = beta.astype(jnp.float32) - mean * scale
        ss = jnp.pad(jnp.stack([scale, shift], axis=0), ((0, 6), (0, 0)))     # (8, Cout)

        # ---- pass 2: recompute matmul, apply scale/shift + leaky_relu, unpadded store ----
        kernel2 = functools.partial(_bn_lrelu_kernel, cout=Cout)
        out = pl.pallas_call(
            kernel2,
            out_shape=jax.ShapeDtypeStruct((M_pad, Cout), jnp.float32),
            grid=(n_tiles,),
            in_specs=[
                pl.BlockSpec((TM, Kpad), lambda i: (i, 0)),
                pl.BlockSpec((Kpad, Cpad), lambda i: (0, 0)),
                pl.BlockSpec((8, Cout), lambda i: (0, 0)),        # scale / shift (resident)
            ],
            out_specs=pl.BlockSpec((TM, Cout), lambda i: (i, 0)), # unpadded output
            compiler_params=par,
            cost_estimate=pl.CostEstimate(
                flops=mm_flops + 4 * M_pad * Cout, transcendentals=0,
                bytes_accessed=patch_bytes + wmat_bytes + 8 * Cout * 4 + out_bytes),
        )(patches, wmat, ss)

    # glue: drop padded pixel rows, back to NCHW (kept to match the PyTorch module's layout)
    out = out[:M, :].reshape(N, OH, OW, Cout)
    return jnp.transpose(out, (0, 3, 1, 2))


def reference_forward(x, w, gamma, beta, *, stride=2, padding=1, conv_dtype=jnp.float32):
    """Pure-JAX reference matching PyTorch train-mode ConvLayer.forward."""
    y = jax.lax.conv_general_dilated(
        x.astype(conv_dtype), w.astype(conv_dtype), (stride, stride),
        ((padding, padding), (padding, padding)),
        dimension_numbers=("NCHW", "OIHW", "NCHW"),
        preferred_element_type=jnp.float32)
    mean = jnp.mean(y, axis=(0, 2, 3), keepdims=True)
    var = jnp.mean((y - mean) ** 2, axis=(0, 2, 3), keepdims=True)
    yhat = (y - mean) * jax.lax.rsqrt(var + BN_EPS)
    yhat = yhat * gamma.reshape(1, -1, 1, 1) + beta.reshape(1, -1, 1, 1)
    return jnp.where(yhat >= 0, yhat, NEG_SLOPE * yhat)


if __name__ == "__main__":
    # Small deterministic problem: batch=2, ni=4, nf=8, spatial=16x16, k=3, stride=2.
    N, Cin, Cout, H, W, Ksz = 2, 4, 8, 16, 16, 3
    key = jax.random.PRNGKey(0)
    k_x, k_w, k_g, k_b = jax.random.split(key, 4)

    x = jax.random.normal(k_x, (N, Cin, H, W), dtype=jnp.float32)
    conv_w = 0.1 * jax.random.normal(k_w, (Cout, Cin, Ksz, Ksz), dtype=jnp.float32)
    gamma = 1.0 + 0.1 * jax.random.normal(k_g, (Cout,), dtype=jnp.float32)
    beta = 0.1 * jax.random.normal(k_b, (Cout,), dtype=jnp.float32)

    # Matched-precision reference (bf16 conv operands, f32 accumulation + f32 BN) and a
    # full-f32 reference that bounds the bf16 input-rounding error of the MXU operands.
    ref_bf16 = reference_forward(x, conv_w, gamma, beta, conv_dtype=jnp.bfloat16)
    ref_f32 = reference_forward(x, conv_w, gamma, beta, conv_dtype=jnp.float32)

    for two_pass in (False, True):   # exercise both the fused and the two-pass path
        out = conv_layer_forward(x, conv_w, gamma, beta, force_two_pass=two_pass)
        out = jax.block_until_ready(out)
        assert out.shape == (N, Cout, H // 2, W // 2), out.shape
        err_b = float(jnp.max(jnp.abs(out - ref_bf16)))
        assert jnp.allclose(out, ref_bf16, atol=2e-3, rtol=2e-3), (two_pass, err_b)
        err_f = float(jnp.max(jnp.abs(out - ref_f32)))
        assert jnp.allclose(out, ref_f32, atol=3e-2, rtol=3e-2), (two_pass, err_f)

    print("KERNEL_OK")
</pallas_src>

<mosaic_0001>
module attributes {stable_mosaic.version = 11 : i64} {
  func.func @_fused_kernel(%arg0: i32, %arg1: memref<128x48xbf16, #tpu.memory_space<vmem>>, %arg2: memref<48x128xbf16, #tpu.memory_space<vmem>>, %arg3: memref<8x8xf32, #tpu.memory_space<vmem>>, %arg4: memref<128x8xf32, #tpu.memory_space<vmem>>, %arg5: memref<2x128xf32, #tpu.memory_space<vmem>>) attributes {dimension_semantics = [#tpu.dimension_semantics<arbitrary>], iteration_bounds = array<i64: 1>, scalar_prefetch = 0 : i64, scratch_operands = 1 : i64, tpu.core_type = #tpu.core_type<tc>, window_params = [{transform_indices = @transform_0, window_bounds = array<i64: 128, 48>}, {pipeline_mode = #tpu.pipeline_mode<synchronous>, transform_indices = @transform_1, window_bounds = array<i64: 48, 128>}, {pipeline_mode = #tpu.pipeline_mode<synchronous>, transform_indices = @transform_2, window_bounds = array<i64: 8, 8>}, {pipeline_mode = #tpu.pipeline_mode<synchronous>, transform_indices = @transform_3, window_bounds = array<i64: 128, 8>}]} {
    %c0_i32 = arith.constant 0 : i32
    %0 = arith.cmpi eq, %arg0, %c0_i32 : i32
    %1 = arith.extui %0 : i1 to i32
    %c0_i32_0 = arith.constant 0 : i32
    %2 = arith.cmpi ne, %1, %c0_i32_0 : i32
    scf.if %2 {
      %cst_13 = arith.constant 0.000000e+00 : f32
      %23 = vector.broadcast %cst_13 : f32 to vector<2x128xf32>
      %c0_14 = arith.constant 0 : index
      %c0_15 = arith.constant 0 : index
      %24 = vector.load %arg5[%c0_14, %c0_15] : memref<2x128xf32, #tpu.memory_space<vmem>>, vector<2x128xf32>
      tpu.vector_store %arg5[%c0_14, %c0_15], %23 {strides = array<i32>} : memref<2x128xf32, #tpu.memory_space<vmem>>, vector<2x128xf32>,
    } else {
    }
    %c0 = arith.constant 0 : index
    %c0_1 = arith.constant 0 : index
    %3 = vector.load %arg1[%c0, %c0_1] : memref<128x48xbf16, #tpu.memory_space<vmem>>, vector<128x48xbf16>
    %c0_2 = arith.constant 0 : index
    %c0_3 = arith.constant 0 : index
    %4 = vector.load %arg2[%c0_2, %c0_3] : memref<48x128xbf16, #tpu.memory_space<vmem>>, vector<48x128xbf16>
    %cst = arith.constant dense<0.000000e+00> : vector<128x128xf32>
    %5 = tpu.matmul %3, %4, %cst {dimension_numbers = #tpu.dot_dimension_numbers<[1], [0], [0], [1], [0, 0, 1, 1], [], []>} : vector<128x48xbf16>, vector<48x128xbf16>, vector<128x128xf32> -> vector<128x128xf32>
    %cst_4 = arith.constant dense<0.000000e+00> : vector<128xf32>
    %6 = vector.multi_reduction <add>, %5, %cst_4 [0] : vector<128x128xf32> to vector<128xf32>
    %7 = vector.shape_cast %6 : vector<128xf32> to vector<1x128xf32>
    %8 = arith.mulf %5, %5 : vector<128x128xf32>
    %cst_5 = arith.constant dense<0.000000e+00> : vector<128xf32>
    %9 = vector.multi_reduction <add>, %8, %cst_5 [0] : vector<128x128xf32> to vector<128xf32>
    %10 = vector.shape_cast %9 : vector<128xf32> to vector<1x128xf32>
    %c0_6 = arith.constant 0 : index
    %c0_7 = arith.constant 0 : index
    %11 = vector.load %arg5[%c0_6, %c0_7] : memref<2x128xf32, #tpu.memory_space<vmem>>, vector<2x128xf32>
    %12 = tpu.concatenate %7, %10 in 0 : vector<1x128xf32>, vector<1x128xf32> -> vector<2x128xf32>
    %13 = arith.addf %11, %12 : vector<2x128xf32>
    %c0_8 = arith.constant 0 : index
    %c0_9 = arith.constant 0 : index
    %14 = vector.load %arg5[%c0_8, %c0_9] : memref<2x128xf32, #tpu.memory_space<vmem>>, vector<2x128xf32>
    tpu.vector_store %arg5[%c0_8, %c0_9], %13 {strides = array<i32>} : memref<2x128xf32, #tpu.memory_space<vmem>>, vector<2x128xf32>,
    %c128_i32 = arith.constant 128 : i32
    %15 = arith.muli %arg0, %c128_i32 : i32
    %16 = tpu.assume_multiple %15, 128 : i32
    %17 = vector.extract_strided_slice %5 {offsets = [0, 0], sizes = [128, 8], strides = [1, 1]} : vector<128x128xf32> to vector<128x8xf32>
    %18 = arith.index_cast %16 : i32 to index
    %c0_10 = arith.constant 0 : index
    %19 = vector.load %arg4[%18, %c0_10] : memref<128x8xf32, #tpu.memory_space<vmem>>, vector<128x8xf32>
    tpu.vector_store %arg4[%18, %c0_10], %17 {strides = array<i32>} : memref<128x8xf32, #tpu.memory_space<vmem>>, vector<128x8xf32>,
    %c0_i32_11 = arith.constant 0 : i32
    %20 = arith.cmpi eq, %arg0, %c0_i32_11 : i32
    %21 = arith.extui %20 : i1 to i32
    %c0_i32_12 = arith.constant 0 : i32
    %22 = arith.cmpi ne, %21, %c0_i32_12 : i32
    scf.if %22 {
      %c0_13 = arith.constant 0 : index
      %c0_14 = arith.constant 0 : index
      %23 = vector.load %arg5[%c0_13, %c0_14] : memref<2x128xf32, #tpu.memory_space<vmem>>, vector<2x128xf32>
      %24 = vector.extract_strided_slice %23 {offsets = [0, 0], sizes = [1, 8], strides = [1, 1]} : vector<2x128xf32> to vector<1x8xf32>
      %cst_15 = arith.constant 7.812500e-03 : f32
      %25 = vector.broadcast %cst_15 : f32 to vector<1x8xf32>
      %26 = arith.mulf %24, %25 : vector<1x8xf32>
      %27 = vector.extract_strided_slice %23 {offsets = [1, 0], sizes = [1, 8], strides = [1, 1]} : vector<2x128xf32> to vector<1x8xf32>
      %cst_16 = arith.constant 7.812500e-03 : f32
      %28 = vector.broadcast %cst_16 : f32 to vector<1x8xf32>
      %29 = arith.mulf %27, %28 : vector<1x8xf32>
      %30 = arith.mulf %26, %26 : vector<1x8xf32>
      %31 = arith.subf %29, %30 : vector<1x8xf32>
      %cst_17 = arith.constant 0.000000e+00 : f32
      %32 = vector.broadcast %cst_17 : f32 to vector<1x8xf32>
      %33 = arith.maximumf %31, %32 : vector<1x8xf32>
      %cst_18 = arith.constant 9.99999974E-6 : f32
      %34 = vector.broadcast %cst_18 : f32 to vector<1x8xf32>
      %35 = arith.addf %33, %34 : vector<1x8xf32>
      %36 = math.rsqrt %35 : vector<1x8xf32>
      %c0_19 = arith.constant 0 : index
      %c0_20 = arith.constant 0 : index
      %37 = vector.load %arg3[%c0_19, %c0_20] : memref<8x8xf32, #tpu.memory_space<vmem>>, vector<1x8xf32>
      %38 = arith.mulf %37, %36 : vector<1x8xf32>
      %c1 = arith.constant 1 : index
      %c0_21 = arith.constant 0 : index
      %39 = vector.load %arg3[%c1, %c0_21] : memref<8x8xf32, #tpu.memory_space<vmem>>, vector<1x8xf32>
      %40 = arith.mulf %26, %38 : vector<1x8xf32>
      %41 = arith.subf %39, %40 : vector<1x8xf32>
      %c0_22 = arith.constant 0 : index
      %c0_23 = arith.constant 0 : index
      %42 = vector.load %arg4[%c0_22, %c0_23] : memref<128x8xf32, #tpu.memory_space<vmem>>, vector<128x8xf32>
      %43 = vector.broadcast %38 : vector<1x8xf32> to vector<128x8xf32>
      %44 = arith.mulf %42, %43 : vector<128x8xf32>
      %45 = vector.broadcast %41 : vector<1x8xf32> to vector<128x8xf32>
      %46 = arith.addf %44, %45 : vector<128x8xf32>
      %cst_24 = arith.constant 0.000000e+00 : f32
      %47 = vector.broadcast %cst_24 : f32 to vector<128x8xf32>
      %48 = arith.cmpf oge, %46, %47 : vector<128x8xf32>
      %cst_25 = arith.constant 0.00999999977 : f32
      %49 = vector.broadcast %cst_25 : f32 to vector<128x8xf32>
      %50 = arith.mulf %49, %46 : vector<128x8xf32>
      %51 = arith.select %48, %46, %50 : vector<128x8xi1>, vector<128x8xf32>
      %c0_26 = arith.constant 0 : index
      %c0_27 = arith.constant 0 : index
      %52 = vector.load %arg4[%c0_26, %c0_27] : memref<128x8xf32, #tpu.memory_space<vmem>>, vector<128x8xf32>
      tpu.vector_store %arg4[%c0_26, %c0_27], %51 {strides = array<i32>} : memref<128x8xf32, #tpu.memory_space<vmem>>, vector<128x8xf32>,
    } else {
    }
    return
  }
  func.func @transform_0(%arg0: i32) -> (i32, i32) {
    %c0_i32 = arith.constant 0 : i32
    %c0_i32_0 = arith.constant 0 : i32
    return %arg0, %c0_i32 : i32, i32
  }
  func.func @transform_1(%arg0: i32) -> (i32, i32) {
    %c0_i32 = arith.constant 0 : i32
    %c0_i32_0 = arith.constant 0 : i32
    %c0_i32_1 = arith.constant 0 : i32
    return %c0_i32, %c0_i32_0 : i32, i32
  }
  func.func @transform_2(%arg0: i32) -> (i32, i32) {
    %c0_i32 = arith.constant 0 : i32
    %c0_i32_0 = arith.constant 0 : i32
    %c0_i32_1 = arith.constant 0 : i32
    return %c0_i32, %c0_i32_0 : i32, i32
  }
  func.func @transform_3(%arg0: i32) -> (i32, i32) {
    %c0_i32 = arith.constant 0 : i32
    %c0_i32_0 = arith.constant 0 : i32
    %c0_i32_1 = arith.constant 0 : i32
    return %c0_i32, %c0_i32_0 : i32, i32
  }
}

</mosaic_0001>

<llo_original>
// kernel: conv_layer_forward.1
$region0: #{conv_layer_forward.1}
  #allocation0 [shape = 'u32[]', space=smem, size = 0x4, offset = 0x4, fixed_abs, tag = 'smem constant byte address 0x4 - core index']
  #allocation1 [shape = 'u32[144,128]{1,0:T(1,128)}', space=vmem, size = 0x12000, scoped, tag = 'internal scratch']
  #allocation2 [shape = 'f32[2,128]{1,0:T(2,128)}', space=vmem, size = 0x400, scoped, tag = 'scratch operand']
  %s0 = inlined_call_operand.vmem [shape: bf16[128,48], index: 0, kind: input, shape index: {}]
  %s1 = inlined_call_operand.vmem [shape: bf16[48,128], index: 1, kind: input, shape index: {}]
  %s2 = inlined_call_operand.vmem [shape: f32[8,8], index: 2, kind: input, shape index: {}]
  %s3 = inlined_call_operand.vmem [shape: f32[128,8], index: 3, kind: output, shape index: {}]
  %s4 = sld [smem:[#allocation0]]
  $region30: #{conv_layer_forward.1} parent=0
    _
  %s6 = ssub.s32 1, %s4
  %s7 = scalar_select 0, %s6, %s4
  // Predicated region
  $region2: #{conv_layer_forward.1} parent=0 // pred_check
    _
  $region3: #{conv_layer_forward.1} parent=0 // pred_check_branch
    %9 = sbr.rel (0) target = $region5
  $region4: #{conv_layer_forward.1} parent=0 // pred_region
    _
  $region5: #{conv_layer_forward.1} parent=0 // pred_fallthru
    _
  // Predicated region
  $region6: #{conv_layer_forward.1} parent=0 // pred_check
    _
  $region7: #{conv_layer_forward.1} parent=0 // pred_check_branch
    %11 = sbr.rel (0) target = $region9
  $region8: #{conv_layer_forward.1} parent=0 // pred_region
    _
  $region9: #{conv_layer_forward.1} parent=0 // pred_fallthru
    _
  // Predicated region
  $region10: #{conv_layer_forward.1} parent=0 // pred_check
    _
  $region11: #{conv_layer_forward.1} parent=0 // pred_check_branch
    %13 = sbr.rel (0) target = $region13
  $region12: #{conv_layer_forward.1} parent=0 // pred_region
    _
  $region13: #{conv_layer_forward.1} parent=0 // pred_fallthru
    _
  %p15 = scmp.eq.s32.totalorder 0, 0
  // Predicated region
  $region14: #{conv_layer_forward.1} parent=0 // pred_check
    %p16 = pneg %p15
  $region15: #{conv_layer_forward.1} parent=0 // pred_check_branch
    %18 = sbr.rel (%p16) target = $region17
  $region16: #{conv_layer_forward.1} parent=0 // pred_region
    %19 = vst [vmem:[#allocation2] sm:$0x3] 0.0
  $region17: #{conv_layer_forward.1} parent=0 // pred_fallthru
    _
  %v20 = vld [vmem:[%s0] sm:$0xf]
  %v21 = vld [vmem:[%s0 + $0x4] sm:$0xf]
  %v22 = vld [vmem:[%s0 + $0x8] sm:$0xf]
  %v23 = vld [vmem:[%s0 + $0xc] sm:$0xf]
  %v24 = vld [vmem:[%s0 + $0x10] sm:$0xf]
  %v25 = vld [vmem:[%s0 + $0x14] sm:$0xf]
  %v26 = vld [vmem:[%s0 + $0x18] sm:$0xf]
  %v27 = vld [vmem:[%s0 + $0x1c] sm:$0xf]
  %v28 = vld [vmem:[%s0 + $0x20] sm:$0xf]
  %v29 = vld [vmem:[%s0 + $0x24] sm:$0xf]
  %v30 = vld [vmem:[%s0 + $0x28] sm:$0xf]
  %v31 = vld [vmem:[%s0 + $0x2c] sm:$0xf]
  %v32 = vld [vmem:[%s0 + $0x30] sm:$0xf]
  %v33 = vld [vmem:[%s0 + $0x34] sm:$0xf]
  %v34 = vld [vmem:[%s0 + $0x38] sm:$0xf]
  %v35 = vld [vmem:[%s0 + $0x3c] sm:$0xf]
  %v36 = vld [vmem:[%s1] sm:$0xf]
  %v37 = vld [vmem:[%s1 + $0x4] sm:$0xf]
  %v38 = vld [vmem:[%s1 + $0x8] sm:$0xf]
  %v39 = vld [vmem:[%s1 + $0xc] sm:$0xf]
  %v40 = vld [vmem:[%s1 + $0x10] sm:$0xf]
  %v41 = vld [vmem:[%s1 + $0x14] sm:$0xf]
  %v58 = vunpack.c.l.b16 %v20
  %v59 = vunpack.c.l.b16 %v21
  %v60 = vunpack.c.l.b16 %v22
  %v61 = vunpack.c.l.b16 %v23
  %v62 = vunpack.c.l.b16 %v24
  %v63 = vunpack.c.l.b16 %v25
  %v64 = vunpack.c.l.b16 %v26
  %v65 = vunpack.c.l.b16 %v27
  %v66 = vunpack.c.l.b16 %v28
  %v67 = vunpack.c.l.b16 %v29
  %v68 = vunpack.c.l.b16 %v30
  %v69 = vunpack.c.l.b16 %v31
  %v70 = vunpack.c.l.b16 %v32
  %v71 = vunpack.c.l.b16 %v33
  %v72 = vunpack.c.l.b16 %v34
  %v73 = vunpack.c.l.b16 %v35
  %v74 = vpack.c.b16 %v59, %v58
  %v75 = vpack.c.b16 %v61, %v60
  %v76 = vpack.c.b16 %v63, %v62
  %v77 = vpack.c.b16 %v65, %v64
  %v78 = vpack.c.b16 %v67, %v66
  %v79 = vpack.c.b16 %v69, %v68
  %v80 = vpack.c.b16 %v71, %v70
  %v81 = vpack.c.b16 %v73, %v72
  %v88 = vunpack.c.l.b16 %v36
  %v89 = vunpack.c.l.b16 %v37
  %v90 = vunpack.c.l.b16 %v38
  %v91 = vunpack.c.l.b16 %v39
  %v92 = vunpack.c.l.b16 %v40
  %v93 = vunpack.c.l.b16 %v41
  %v94 = vpack.c.b16 %v89, %v88
  %v95 = vpack.c.b16 %v91, %v90
  %v96 = vpack.c.b16 %v93, %v92
  %vm100 = vcmask 392192
  %v102 = vsel %vm100, %v74, 0
  %v105 = vsel %vm100, %v75, 0
  %v108 = vsel %vm100, %v76, 0
  %v111 = vsel %vm100, %v77, 0
  %v114 = vsel %vm100, %v78, 0
  %v117 = vsel %vm100, %v79, 0
  %v120 = vsel %vm100, %v80, 0
  %v123 = vsel %vm100, %v81, 0
  %125 = vmatprep.subr.bf16.mxu0 0
  %126 = vmatpush1.bf16.msra.mxu0 %v94
  %127 = vmatprep.subr.bf16.mxu0 0
  %128 = vmatpush1.bf16.msra.mxu0 %v95
  %129 = vmatprep.subr.bf16.mxu0 0
  %130 = vmatpush1.bf16.msra.mxu0 %v96
  %131 = vmatprep.subr.bf16.mxu0 0
  %132 = vmatpush1.bf16.msra.mxu0 0
  %133 = vmatprep.subr.bf16.mxu0 0
  %134 = vmatpush1.bf16.msra.mxu0 0
  %135 = vmatprep.subr.bf16.mxu0 0
  %136 = vmatpush1.bf16.msra.mxu0 0
  %137 = vmatprep.subr.bf16.mxu0 0
  %138 = vmatpush1.bf16.msra.mxu0 0
  %139 = vmatprep.subr.bf16.mxu0 0
  %140 = vmatpush1.bf16.msra.mxu0 0
  %141 = vmatprep.subr.bf16.mxu0 0
  %142 = vmatpush1.bf16.msra.mxu0 0
  %143 = vmatprep.subr.bf16.mxu0 0
  %144 = vmatpush1.bf16.msra.mxu0 0
  %145 = vmatprep.subr.bf16.mxu0 0
  %146 = vmatpush1.bf16.msra.mxu0 0
  %147 = vmatprep.subr.bf16.mxu0 0
  %148 = vmatpush1.bf16.msra.mxu0 0
  %149 = vmatprep.subr.bf16.mxu0 0
  %150 = vmatpush1.bf16.msra.mxu0 0
  %151 = vmatprep.subr.bf16.mxu0 0
  %152 = vmatpush1.bf16.msra.mxu0 0
  %153 = vmatprep.subr.bf16.mxu0 0
  %154 = vmatpush1.bf16.msra.mxu0 0
  %155 = vmatprep.subr.bf16.mxu0 0
  %156 = vmatpush1.bf16.msra.mxu0 0
  %157 = vmatprep.mubr.bf16.mxu0 0
  %158 = vmatmul.mubr.bf16.gmra.mrb[0].mxu0 %v102
  %v159 = vpop.f32.mrb[0].mxu0
  %v160 = vadd.f32 0.0, %v159
  %v161 = vpop.f32.mrb[0].mxu0
  %v162 = vpop.f32.mrb[0].mxu0
  %v163 = vadd.f32 0.0, %v162
  %v164 = vpop.f32.mrb[0].mxu0
  %165 = vmatprep.mubr.bf16.mxu0 0
  %166 = vmatmul.mubr.bf16.gmra.mrb[0].mxu0 %v105
  %v167 = vpop.f32.mrb[0].mxu0
  %v168 = vadd.f32 0.0, %v167
  %v169 = vpop.f32.mrb[0].mxu0
  %v170 = vpop.f32.mrb[0].mxu0
  %v171 = vadd.f32 0.0, %v170
  %v172 = vpop.f32.mrb[0].mxu0
  %173 = vmatprep.mubr.bf16.mxu0 0
  %174 = vmatmul.mubr.bf16.gmra.mrb[0].mxu0 %v108
  %v175 = vpop.f32.mrb[0].mxu0
  %v176 = vadd.f32 0.0, %v175
  %v177 = vpop.f32.mrb[0].mxu0
  %v178 = vpop.f32.mrb[0].mxu0
  %v179 = vadd.f32 0.0, %v178
  %v180 = vpop.f32.mrb[0].mxu0
  %181 = vmatprep.mubr.bf16.mxu0 0
  %182 = vmatmul.mubr.bf16.gmra.mrb[0].mxu0 %v111
  %v183 = vpop.f32.mrb[0].mxu0
  %v184 = vadd.f32 0.0, %v183
  %v185 = vpop.f32.mrb[0].mxu0
  %v186 = vpop.f32.mrb[0].mxu0
  %v187 = vadd.f32 0.0, %v186
  %v188 = vpop.f32.mrb[0].mxu0
  %189 = vmatprep.mubr.bf16.mxu0 0
  %190 = vmatmul.mubr.bf16.gmra.mrb[0].mxu0 %v114
  %v191 = vpop.f32.mrb[0].mxu0
  %v192 = vadd.f32 0.0, %v191
  %v193 = vpop.f32.mrb[0].mxu0
  %v194 = vpop.f32.mrb[0].mxu0
  %v195 = vadd.f32 0.0, %v194
  %v196 = vpop.f32.mrb[0].mxu0
  %197 = vmatprep.mubr.bf16.mxu0 0
  %198 = vmatmul.mubr.bf16.gmra.mrb[0].mxu0 %v117
  %v199 = vpop.f32.mrb[0].mxu0
  %v200 = vadd.f32 0.0, %v199
  %v201 = vpop.f32.mrb[0].mxu0
  %v202 = vpop.f32.mrb[0].mxu0
  %v203 = vadd.f32 0.0, %v202
  %v204 = vpop.f32.mrb[0].mxu0
  %205 = vmatprep.mubr.bf16.mxu0 0
  %206 = vmatmul.mubr.bf16.gmra.mrb[0].mxu0 %v120
  %v207 = vpop.f32.mrb[0].mxu0
  %v208 = vadd.f32 0.0, %v207
  %v209 = vpop.f32.mrb[0].mxu0
  %v210 = vpop.f32.mrb[0].mxu0
  %v211 = vadd.f32 0.0, %v210
  %v212 = vpop.f32.mrb[0].mxu0
  %213 = vmatprep.mubr.bf16.mxu0 0
  %214 = vmatmul.mubr.bf16.gmra.mrb[0].mxu0 %v123
  %v215 = vpop.f32.mrb[0].mxu0
  %v216 = vadd.f32 0.0, %v215
  %v217 = vpop.f32.mrb[0].mxu0
  %v218 = vpop.f32.mrb[0].mxu0
  %v219 = vadd.f32 0.0, %v218
  %v220 = vpop.f32.mrb[0].mxu0
  %221 = vdwg.mxu0
  %v222 = vadd.f32 %v160, %v163
  %v223 = vadd.f32 %v222, %v168
  %v224 = vadd.f32 %v223, %v171
  %v225 = vadd.f32 %v224, %v176
  %v226 = vadd.f32 %v225, %v179
  %v227 = vadd.f32 %v226, %v184
  %v228 = vadd.f32 %v227, %v187
  %v229 = vadd.f32 %v228, %v192
  %v230 = vadd.f32 %v229, %v195
  %v231 = vadd.f32 %v230, %v200
  %v232 = vadd.f32 %v231, %v203
  %v233 = vadd.f32 %v232, %v208
  %v234 = vadd.f32 %v233, %v211
  %v235 = vadd.f32 %v234, %v216
  %v236 = vadd.f32 %v235, %v219
  %v237 = vrot.slane %v236, 4
  %v238 = vadd.f32 %v236, %v237
  %v239 = vrot.slane %v238, 2
  %v240 = vadd.f32 %v238, %v239
  %v241 = vrot.slane %v240, 1
  %v242 = vadd.f32 %v240, %v241
  %v243 = vmul.f32 %v160, %v160
  %v244 = vmul.f32 %v163, %v163
  %v245 = vmul.f32 %v168, %v168
  %v246 = vmul.f32 %v171, %v171
  %v247 = vmul.f32 %v176, %v176
  %v248 = vmul.f32 %v179, %v179
  %v249 = vmul.f32 %v184, %v184
  %v250 = vmul.f32 %v187, %v187
  %v251 = vmul.f32 %v192, %v192
  %v252 = vmul.f32 %v195, %v195
  %v253 = vmul.f32 %v200, %v200
  %v254 = vmul.f32 %v203, %v203
  %v255 = vmul.f32 %v208, %v208
  %v256 = vmul.f32 %v211, %v211
  %v257 = vmul.f32 %v216, %v216
  %v258 = vmul.f32 %v219, %v219
  %v259 = vadd.f32 %v243, %v244
  %v260 = vadd.f32 %v259, %v245
  %v261 = vadd.f32 %v260, %v246
  %v262 = vadd.f32 %v261, %v247
  %v263 = vadd.f32 %v262, %v248
  %v264 = vadd.f32 %v263, %v249
  %v265 = vadd.f32 %v264, %v250
  %v266 = vadd.f32 %v265, %v251
  %v267 = vadd.f32 %v266, %v252
  %v268 = vadd.f32 %v267, %v253
  %v269 = vadd.f32 %v268, %v254
  %v270 = vadd.f32 %v269, %v255
  %v271 = vadd.f32 %v270, %v256
  %v272 = vadd.f32 %v271, %v257
  %v273 = vadd.f32 %v272, %v258
  %v274 = vrot.slane %v273, 4
  %v275 = vadd.f32 %v273, %v274
  %v276 = vrot.slane %v275, 2
  %v277 = vadd.f32 %v275, %v276
  %v278 = vrot.slane %v277, 1
  %v279 = vadd.f32 %v277, %v278
  %v280 = vld [vmem:[#allocation2] sm:$0x3]
  %vm281 = vcmask 1040384
  %v282 = vsel %vm281, %v242, %v279
  %v283 = vadd.f32 %v280, %v282
  %284 = vst [vmem:[#allocation2] sm:$0x3] %v283
  %s285 = smul.u32 0, 128
  %s286 = scalar_lea.vmem %s3, %s285
  %vm287 = vcmask 64512
  %288 = vst.msk [vmem:[%s286] sm:$0xff] %vm287, %v160
  %289 = vst.msk [vmem:[%s286 + $0x8] sm:$0xff] %vm287, %v163
  %290 = vst.msk [vmem:[%s286 + $0x10] sm:$0xff] %vm287, %v168
  %291 = vst.msk [vmem:[%s286 + $0x18] sm:$0xff] %vm287, %v171
  %292 = vst.msk [vmem:[%s286 + $0x20] sm:$0xff] %vm287, %v176
  %293 = vst.msk [vmem:[%s286 + $0x28] sm:$0xff] %vm287, %v179
  %294 = vst.msk [vmem:[%s286 + $0x30] sm:$0xff] %vm287, %v184
  %295 = vst.msk [vmem:[%s286 + $0x38] sm:$0xff] %vm287, %v187
  %296 = vst.msk [vmem:[%s286 + $0x40] sm:$0xff] %vm287, %v192
  %297 = vst.msk [vmem:[%s286 + $0x48] sm:$0xff] %vm287, %v195
  %298 = vst.msk [vmem:[%s286 + $0x50] sm:$0xff] %vm287, %v200
  %299 = vst.msk [vmem:[%s286 + $0x58] sm:$0xff] %vm287, %v203
  %300 = vst.msk [vmem:[%s286 + $0x60] sm:$0xff] %vm287, %v208
  %301 = vst.msk [vmem:[%s286 + $0x68] sm:$0xff] %vm287, %v211
  %302 = vst.msk [vmem:[%s286 + $0x70] sm:$0xff] %vm287, %v216
  %303 = vst.msk [vmem:[%s286 + $0x78] sm:$0xff] %vm287, %v219
  // Predicated region
  $region18: #{conv_layer_forward.1} parent=0 // pred_check
    %p304 = pneg %p15
  $region19: #{conv_layer_forward.1} parent=0 // pred_check_branch
    %306 = sbr.rel (%p304) target = $region21
  $region20: #{conv_layer_forward.1} parent=0 // pred_region
    %v307 = vld [vmem:[#allocation2] sm:$0x3]
    %v308 = vmul.f32 %v307, 0.0078125
    %v309 = vmul.f32 %v308, %v308
    %v311 = vrot.slane %v309, 7
    %v313 = vsub.f32 %v308, %v311
    %v314 = vmax.f32 %v313, 0.0
    %v315 = vadd.f32 %v314, 1e-05
    %v316 = vrsqrt.pop %v315
    %v317 = vld [vmem:[%s2] sm:$0x1]
    %v319 = vrot.slane %v316, 1
    %v321 = vmul.f32 %v317, %v319
    %v322 = vld [vmem:[%s2 + $0x1] sm:$0x1]
    %v323 = vmul.f32 %v308, %v321
    %v324 = vsub.f32 %v322, %v323
    %v325 = vld [vmem:[%s3] sm:$0xff]
    %v326 = vld [vmem:[%s3 + $0x8] sm:$0xff]
    %v327 = vld [vmem:[%s3 + $0x10] sm:$0xff]
    %v328 = vld [vmem:[%s3 + $0x18] sm:$0xff]
    %v329 = vld [vmem:[%s3 + $0x20] sm:$0xff]
    %v330 = vld [vmem:[%s3 + $0x28] sm:$0xff]
    %v331 = vld [vmem:[%s3 + $0x30] sm:$0xff]
    %v332 = vld [vmem:[%s3 + $0x38] sm:$0xff]
    %v333 = vld [vmem:[%s3 + $0x40] sm:$0xff]
    %v334 = vld [vmem:[%s3 + $0x48] sm:$0xff]
    %v335 = vld [vmem:[%s3 + $0x50] sm:$0xff]
    %v336 = vld [vmem:[%s3 + $0x58] sm:$0xff]
    %v337 = vld [vmem:[%s3 + $0x60] sm:$0xff]
    %v338 = vld [vmem:[%s3 + $0x68] sm:$0xff]
    %v339 = vld [vmem:[%s3 + $0x70] sm:$0xff]
    %v340 = vld [vmem:[%s3 + $0x78] sm:$0xff]
    %v341 = vlaneseq
    %v342 = vshrl.u32 %v341, 7
    %v343 = vsub.s32 0, %v342
    %v344 = vrot.slane %v321, %v343
    %v345 = vmul.f32 %v325, %v344
    %v346 = vmul.f32 %v326, %v344
    %v347 = vmul.f32 %v327, %v344
    %v348 = vmul.f32 %v328, %v344
    %v349 = vmul.f32 %v329, %v344
    %v350 = vmul.f32 %v330, %v344
    %v351 = vmul.f32 %v331, %v344
    %v352 = vmul.f32 %v332, %v344
    %v353 = vmul.f32 %v333, %v344
    %v354 = vmul.f32 %v334, %v344
    %v355 = vmul.f32 %v335, %v344
    %v356 = vmul.f32 %v336, %v344
    %v357 = vmul.f32 %v337, %v344
    %v358 = vmul.f32 %v338, %v344
    %v359 = vmul.f32 %v339, %v344
    %v360 = vmul.f32 %v340, %v344
    %v361 = vlaneseq
    %v362 = vshrl.u32 %v361, 7
    %v363 = vsub.s32 0, %v362
    %v364 = vrot.slane %v324, %v363
    %v365 = vadd.f32 %v345, %v364
    %v366 = vadd.f32 %v346, %v364
    %v367 = vadd.f32 %v347, %v364
    %v368 = vadd.f32 %v348, %v364
    %v369 = vadd.f32 %v349, %v364
    %v370 = vadd.f32 %v350, %v364
    %v371 = vadd.f32 %v351, %v364
    %v372 = vadd.f32 %v352, %v364
    %v373 = vadd.f32 %v353, %v364
    %v374 = vadd.f32 %v354, %v364
    %v375 = vadd.f32 %v355, %v364
    %v376 = vadd.f32 %v356, %v364
    %v377 = vadd.f32 %v357, %v364
    %v378 = vadd.f32 %v358, %v364
    %v379 = vadd.f32 %v359, %v364
    %v380 = vadd.f32 %v360, %v364
    %vm381 = vcmp.ge.f32.partialorder %v365, 0.0
    %vm382 = vcmp.ge.f32.partialorder %v366, 0.0
    %vm383 = vcmp.ge.f32.partialorder %v367, 0.0
    %vm384 = vcmp.ge.f32.partialorder %v368, 0.0
    %vm385 = vcmp.ge.f32.partialorder %v369, 0.0
    %vm386 = vcmp.ge.f32.partialorder %v370, 0.0
    %vm387 = vcmp.ge.f32.partialorder %v371, 0.0
    %vm388 = vcmp.ge.f32.partialorder %v372, 0.0
    %vm389 = vcmp.ge.f32.partialorder %v373, 0.0
    %vm390 = vcmp.ge.f32.partialorder %v374, 0.0
    %vm391 = vcmp.ge.f32.partialorder %v375, 0.0
    %vm392 = vcmp.ge.f32.partialorder %v376, 0.0
    %vm393 = vcmp.ge.f32.partialorder %v377, 0.0
    %vm394 = vcmp.ge.f32.partialorder %v378, 0.0
    %vm395 = vcmp.ge.f32.partialorder %v379, 0.0
    %vm396 = vcmp.ge.f32.partialorder %v380, 0.0
    %v397 = vmul.f32 %v365, 0.01
    %v398 = vmul.f32 %v366, 0.01
    %v399 = vmul.f32 %v367, 0.01
    %v400 = vmul.f32 %v368, 0.01
    %v401 = vmul.f32 %v369, 0.01
    %v402 = vmul.f32 %v370, 0.01
    %v403 = vmul.f32 %v371, 0.01
    %v404 = vmul.f32 %v372, 0.01
    %v405 = vmul.f32 %v373, 0.01
    %v406 = vmul.f32 %v374, 0.01
    %v407 = vmul.f32 %v375, 0.01
    %v408 = vmul.f32 %v376, 0.01
    %v409 = vmul.f32 %v377, 0.01
    %v410 = vmul.f32 %v378, 0.01
    %v411 = vmul.f32 %v379, 0.01
    %v412 = vmul.f32 %v380, 0.01
    %v413 = vsel %vm381, %v365, %v397
    %v414 = vsel %vm382, %v366, %v398
    %v415 = vsel %vm383, %v367, %v399
    %v416 = vsel %vm384, %v368, %v400
    %v417 = vsel %vm385, %v369, %v401
    %v418 = vsel %vm386, %v370, %v402
    %v419 = vsel %vm387, %v371, %v403
    %v420 = vsel %vm388, %v372, %v404
    %v421 = vsel %vm389, %v373, %v405
    %v422 = vsel %vm390, %v374, %v406
    %v423 = vsel %vm391, %v375, %v407
    %v424 = vsel %vm392, %v376, %v408
    %v425 = vsel %vm393, %v377, %v409
    %v426 = vsel %vm394, %v378, %v410
    %v427 = vsel %vm395, %v379, %v411
    %v428 = vsel %vm396, %v380, %v412
    %429 = vst.msk [vmem:[%s3] sm:$0xff] %vm287, %v413
    %430 = vst.msk [vmem:[%s3 + $0x8] sm:$0xff] %vm287, %v414
    %431 = vst.msk [vmem:[%s3 + $0x10] sm:$0xff] %vm287, %v415
    %432 = vst.msk [vmem:[%s3 + $0x18] sm:$0xff] %vm287, %v416
    %433 = vst.msk [vmem:[%s3 + $0x20] sm:$0xff] %vm287, %v417
    %434 = vst.msk [vmem:[%s3 + $0x28] sm:$0xff] %vm287, %v418
    %435 = vst.msk [vmem:[%s3 + $0x30] sm:$0xff] %vm287, %v419
    %436 = vst.msk [vmem:[%s3 + $0x38] sm:$0xff] %vm287, %v420
    %437 = vst.msk [vmem:[%s3 + $0x40] sm:$0xff] %vm287, %v421
    %438 = vst.msk [vmem:[%s3 + $0x48] sm:$0xff] %vm287, %v422
    %439 = vst.msk [vmem:[%s3 + $0x50] sm:$0xff] %vm287, %v423
    %440 = vst.msk [vmem:[%s3 + $0x58] sm:$0xff] %vm287, %v424
    %441 = vst.msk [vmem:[%s3 + $0x60] sm:$0xff] %vm287, %v425
    %442 = vst.msk [vmem:[%s3 + $0x68] sm:$0xff] %vm287, %v426
    %443 = vst.msk [vmem:[%s3 + $0x70] sm:$0xff] %vm287, %v427
    %444 = vst.msk [vmem:[%s3 + $0x78] sm:$0xff] %vm287, %v428
  $region21: #{conv_layer_forward.1} parent=0 // pred_fallthru
    _
  // Predicated region
  $region22: #{conv_layer_forward.1} parent=0 // pred_check
    _
  $region23: #{conv_layer_forward.1} parent=0 // pred_check_branch
    %446 = sbr.rel (0) target = $region25
  $region24: #{conv_layer_forward.1} parent=0 // pred_region
    _
  $region25: #{conv_layer_forward.1} parent=0 // pred_fallthru
    _
  // Predicated region
  $region26: #{conv_layer_forward.1} parent=0 // pred_check
    _
  $region27: #{conv_layer_forward.1} parent=0 // pred_check_branch
    %448 = sbr.rel (0) target = $region29
  $region28: #{conv_layer_forward.1} parent=0 // pred_region
    _
  $region29: #{conv_layer_forward.1} parent=0 // pred_fallthru
    _

</llo_original>
